<compile_context>
chip_gen: v7x
topology: tpu7x:2x2x1
jax: 0.10.0
libtpu: 0.0.40
codegen_flags: <defaults>
</compile_context>

<pallas_src>
import jax
import jax.numpy as jnp
from jax.experimental import pallas as pl
from jax.experimental.pallas import tpu as pltpu


# ------------------------------- kernels ------------------------------------

def _linear_kernel_lane_dense(x_ref, w_ref, b_ref, o_ref):
    """Preferred kernel: lane-dense (1, 1, tile_b) output block."""
    x = x_ref[...].astype(jnp.float32)     # (tile_b, F); cast is a free VPU op
    w = w_ref[...].astype(jnp.float32)     # (1, F) lane-dense weight row
    b = b_ref[0, 0]                        # scalar f32 from SMEM
    # VPU multiply + XLU lane reduce; the MXU stays idle for this N=1 layer.
    y = jnp.sum(x * w, axis=-1) + b        # (tile_b,) f32
    # Sublane->lane relayout happens here; the store is unmasked and the
    # output writeback DMA is contiguous.
    o_ref[0, 0, :] = y


def _linear_kernel_col(x_ref, w_ref, b_ref, o_ref):
    """Fallback kernel: (tile_b, 1) output block (lane-sparse, known-good)."""
    x = x_ref[...].astype(jnp.float32)
    w = w_ref[...].astype(jnp.float32)
    b = b_ref[0, 0]
    o_ref[...] = jnp.sum(x * w, axis=-1, keepdims=True) + b


# ----------------------------- tile sizing -----------------------------------

def _vmem_limit_bytes():
    """Generation-aware scoped-VMEM request (headroom under physical cap)."""
    cap = 64 * 1024 * 1024                 # conservative default (v7x VMEM)
    try:
        cap = int(pltpu.get_tpu_info().vmem_capacity_bytes)
    except Exception:
        pass
    # v5e/v6e (128 MiB) -> 96 MiB, v7x (64 MiB) -> 48 MiB; never below 32 MiB.
    return max(32 * 1024 * 1024, min((cap * 3) // 4, 100 * 1024 * 1024))


def _select_tile_b(B, F, x_itemsize, vmem_limit_bytes):
    """Byte-budgeted batch tile (multiple of the sublane packing)."""
    sublane = {4: 8, 2: 16, 1: 32}.get(x_itemsize, 8)
    padded_f = pl.cdiv(F, 128) * 128       # lane padding of the x/w VMEM tiles

    # 1) ~8 MiB of real x bytes per grid step amortizes the ~0.35 us per-step
    #    overhead to <1% at any generation's HBM bandwidth.
    target_bytes = 8 * 1024 * 1024
    tile_b = max(sublane, target_bytes // max(1, F * x_itemsize))

    # 2) VMEM cap: double-buffered lane-padded x tile + double-buffered output
    #    buffers (conservatively assuming the (tile_b, 1)-padded fallback
    #    layout) + the (8, padded_f) weight row must stay inside the budget.
    budget = int(vmem_limit_bytes * 0.6)
    w_bytes = 2 * 8 * padded_f * 4
    per_row = 2 * padded_f * x_itemsize + 2 * 128 * 4
    tile_b = min(tile_b, max(sublane, (budget - w_bytes) // per_row))

    # 3) Keep >= ~8 grid steps when B allows it so v7x's 2 TensorCores both
    #    stream several blocks of the "parallel" axis (no-op on v5e/v6e).
    tile_b = min(tile_b, max(sublane, pl.cdiv(B, 8)))

    # 4) Bound the per-tile sublane->lane output relayout / unrolled code size.
    tile_b = min(tile_b, 16384)

    # TODO(synk): if F is ever so wide that even an 8-row double-buffered tile
    # exceeds the VMEM budget, add a second "arbitrary" grid axis over F with
    # a (tile_b, 1) f32 accumulator scratch and pl.when init/finalize instead
    # of shrinking tile_b further.
    return int(max(sublane, (tile_b // sublane) * sublane))


# ------------------------------- wrapper -------------------------------------

def _build_call(n_blocks, tile_b, F, lane_dense, vmem_limit, cost):
    x_spec = pl.BlockSpec((tile_b, F), lambda i: (i, 0))         # pipelined
    w_spec = pl.BlockSpec((1, F), lambda i: (0, 0))              # resident row
    b_spec = pl.BlockSpec(memory_space=pltpu.MemorySpace.SMEM)   # scalar bias

    if lane_dense:
        kernel = _linear_kernel_lane_dense
        out_shape = jax.ShapeDtypeStruct((n_blocks, 1, tile_b), jnp.float32)
        out_spec = pl.BlockSpec((1, 1, tile_b), lambda i: (i, 0, 0))
    else:
        kernel = _linear_kernel_col
        out_shape = jax.ShapeDtypeStruct((n_blocks * tile_b, 1), jnp.float32)
        out_spec = pl.BlockSpec((tile_b, 1), lambda i: (i, 0))

    return pl.pallas_call(
        kernel,
        out_shape=out_shape,
        grid_spec=pl.GridSpec(
            grid=(n_blocks,),
            in_specs=[x_spec, w_spec, b_spec],
            out_specs=out_spec,
        ),
        compiler_params=pltpu.CompilerParams(
            dimension_semantics=("parallel",),   # batch tiles are independent
            vmem_limit_bytes=vmem_limit,
        ),
        cost_estimate=cost,
    )


def linear_forward(x, weight, bias):
    """y = x @ weight.T + bias; weight in PyTorch (1, F) convention, bias (1,)."""
    B, F = x.shape
    w_row = weight.reshape(1, F)                    # native (1, F): no transpose
    b2 = bias.reshape(1, 1).astype(jnp.float32)     # 4-byte scalar for SMEM

    vmem_limit = _vmem_limit_bytes()
    tile_b = _select_tile_b(B, F, x.dtype.itemsize, vmem_limit)
    n_blocks = pl.cdiv(B, tile_b)

    cost = pl.CostEstimate(
        flops=2 * B * F,
        transcendentals=0,
        bytes_accessed=B * F * x.dtype.itemsize + F * w_row.dtype.itemsize
        + B * 4 + 4,
    )

    try:
        out = _build_call(n_blocks, tile_b, F, True, vmem_limit, cost)(x, w_row, b2)
    except Exception:
        # Fallback if the lane-dense relayout fails to lower on this toolchain
        # (only engages under eager execution).
        out = _build_call(n_blocks, tile_b, F, False, vmem_limit, cost)(x, w_row, b2)

    # Both layouts flatten to batch order; drop padded rows, match (B, 1).
    return out.reshape(-1)[:B].reshape(B, 1)


# -------------------------------- demo ---------------------------------------

if __name__ == "__main__":
    n_feature = 32
    key = jax.random.PRNGKey(0)
    kx1, kx2, kx3, kw, kb = jax.random.split(key, 5)

    # Deterministic init mimicking nn.Linear's uniform(-1/sqrt(F), 1/sqrt(F)).
    bound = 1.0 / jnp.sqrt(jnp.float32(n_feature))
    weight = jax.random.uniform(kw, (1, n_feature), jnp.float32, -bound, bound)
    bias = jax.random.uniform(kb, (1,), jnp.float32, -bound, bound)

    def ref_fn(xv):
        return xv.astype(jnp.float32) @ weight.T + bias

    # 1) Basic f32 case (batch divisible by the tile).
    x1 = jax.random.normal(kx1, (8, n_feature), jnp.float32)
    y1 = linear_forward(x1, weight, bias)
    jax.block_until_ready(y1)
    assert y1.shape == (8, 1)
    assert jnp.allclose(y1, ref_fn(x1), atol=1e-5, rtol=1e-5)

    # 2) Ragged batch -> exercises the cdiv grid + padded boundary block.
    x2 = jax.random.normal(kx2, (13, n_feature), jnp.float32)
    y2 = linear_forward(x2, weight, bias)
    jax.block_until_ready(y2)
    assert y2.shape == (13, 1)
    assert jnp.allclose(y2, ref_fn(x2), atol=1e-5, rtol=1e-5)

    # 3) bf16 activations stay bf16 through the DMA; f32 accumulation in-kernel.
    x3 = jax.random.normal(kx3, (16, n_feature), jnp.bfloat16)
    y3 = linear_forward(x3, weight, bias)
    jax.block_until_ready(y3)
    assert y3.shape == (16, 1)
    assert jnp.allclose(y3, ref_fn(x3), atol=2e-2, rtol=2e-2)

    print("KERNEL_OK")
</pallas_src>

<mosaic_0001>
module attributes {stable_mosaic.version = 11 : i64} {
  func.func @_linear_kernel_lane_dense(%arg0: i32, %arg1: memref<8x32xf32, #tpu.memory_space<vmem>>, %arg2: memref<1x32xf32, #tpu.memory_space<vmem>>, %arg3: memref<1x1xf32, #tpu.memory_space<smem>>, %arg4: memref<1x1x8xf32, #tpu.memory_space<vmem>>) attributes {dimension_semantics = [#tpu.dimension_semantics<parallel>], iteration_bounds = array<i64: 1>, scalar_prefetch = 0 : i64, scratch_operands = 0 : i64, tpu.core_type = #tpu.core_type<tc>, window_params = [{transform_indices = @transform_0, window_bounds = array<i64: 8, 32>}, {pipeline_mode = #tpu.pipeline_mode<synchronous>, transform_indices = @transform_1, window_bounds = array<i64: 1, 32>}, {transform_indices = @transform_2, window_bounds = array<i64: 1, 1>}, {transform_indices = @transform_3, window_bounds = array<i64: 1, 1, 8>}]} {
    %c0 = arith.constant 0 : index
    %c0_0 = arith.constant 0 : index
    %0 = vector.load %arg1[%c0, %c0_0] : memref<8x32xf32, #tpu.memory_space<vmem>>, vector<8x32xf32>
    %c0_1 = arith.constant 0 : index
    %c0_2 = arith.constant 0 : index
    %1 = vector.load %arg2[%c0_1, %c0_2] : memref<1x32xf32, #tpu.memory_space<vmem>>, vector<1x32xf32>
    %c0_3 = arith.constant 0 : index
    %c0_4 = arith.constant 0 : index
    %2 = memref.load %arg3[%c0_3, %c0_4] : memref<1x1xf32, #tpu.memory_space<smem>>
    %3 = vector.broadcast %1 : vector<1x32xf32> to vector<8x32xf32>
    %4 = arith.mulf %0, %3 : vector<8x32xf32>
    %cst = arith.constant dense<0.000000e+00> : vector<8xf32>
    %5 = vector.multi_reduction <add>, %4, %cst [1] : vector<8x32xf32> to vector<8xf32>
    %6 = vector.broadcast %2 : f32 to vector<8xf32>
    %7 = arith.addf %5, %6 : vector<8xf32>
    %c0_5 = arith.constant 0 : index
    %c0_6 = arith.constant 0 : index
    %c0_7 = arith.constant 0 : index
    %8 = vector.load %arg4[%c0_5, %c0_6, %c0_7] : memref<1x1x8xf32, #tpu.memory_space<vmem>>, vector<1x1x8xf32>
    %9 = vector.shape_cast %8 : vector<1x1x8xf32> to vector<8xf32>
    %10 = vector.shape_cast %7 : vector<8xf32> to vector<1x1x8xf32>
    tpu.vector_store %arg4[%c0_5, %c0_6, %c0_7], %10 {strides = array<i32>} : memref<1x1x8xf32, #tpu.memory_space<vmem>>, vector<1x1x8xf32>,
    return
  }
  func.func @transform_0(%arg0: i32) -> (i32, i32) {
    %c0_i32 = arith.constant 0 : i32
    %c0_i32_0 = arith.constant 0 : i32
    return %arg0, %c0_i32 : i32, i32
  }
  func.func @transform_1(%arg0: i32) -> (i32, i32) {
    %c0_i32 = arith.constant 0 : i32
    %c0_i32_0 = arith.constant 0 : i32
    %c0_i32_1 = arith.constant 0 : i32
    return %c0_i32, %c0_i32_0 : i32, i32
  }
  func.func @transform_2(%arg0: i32) -> (i32, i32) {
    %c0_i32 = arith.constant 0 : i32
    %c0_i32_0 = arith.constant 0 : i32
    %c0_i32_1 = arith.constant 0 : i32
    return %c0_i32, %c0_i32_0 : i32, i32
  }
  func.func @transform_3(%arg0: i32) -> (i32, i32, i32) {
    %c0_i32 = arith.constant 0 : i32
    %c0_i32_0 = arith.constant 0 : i32
    %c0_i32_1 = arith.constant 0 : i32
    return %arg0, %c0_i32, %c0_i32_0 : i32, i32, i32
  }
}

module attributes {stable_mosaic.version = 11 : i64} {
  func.func @_linear_kernel_col(%arg0: i32, %arg1: memref<8x32xf32, #tpu.memory_space<vmem>>, %arg2: memref<1x32xf32, #tpu.memory_space<vmem>>, %arg3: memref<1x1xf32, #tpu.memory_space<smem>>, %arg4: memref<8x1xf32, #tpu.memory_space<vmem>>) attributes {dimension_semantics = [#tpu.dimension_semantics<parallel>], iteration_bounds = array<i64: 1>, scalar_prefetch = 0 : i64, scratch_operands = 0 : i64, tpu.core_type = #tpu.core_type<tc>, window_params = [{transform_indices = @transform_0, window_bounds = array<i64: 8, 32>}, {pipeline_mode = #tpu.pipeline_mode<synchronous>, transform_indices = @transform_1, window_bounds = array<i64: 1, 32>}, {transform_indices = @transform_2, window_bounds = array<i64: 1, 1>}, {transform_indices = @transform_3, window_bounds = array<i64: 8, 1>}]} {
    %c0 = arith.constant 0 : index
    %c0_0 = arith.constant 0 : index
    %0 = vector.load %arg1[%c0, %c0_0] : memref<8x32xf32, #tpu.memory_space<vmem>>, vector<8x32xf32>
    %c0_1 = arith.constant 0 : index
    %c0_2 = arith.constant 0 : index
    %1 = vector.load %arg2[%c0_1, %c0_2] : memref<1x32xf32, #tpu.memory_space<vmem>>, vector<1x32xf32>
    %c0_3 = arith.constant 0 : index
    %c0_4 = arith.constant 0 : index
    %2 = memref.load %arg3[%c0_3, %c0_4] : memref<1x1xf32, #tpu.memory_space<smem>>
    %3 = vector.broadcast %1 : vector<1x32xf32> to vector<8x32xf32>
    %4 = arith.mulf %0, %3 : vector<8x32xf32>
    %cst = arith.constant dense<0.000000e+00> : vector<8xf32>
    %5 = vector.multi_reduction <add>, %4, %cst [1] : vector<8x32xf32> to vector<8xf32>
    %6 = vector.shape_cast %5 : vector<8xf32> to vector<8x1xf32>
    %7 = vector.broadcast %2 : f32 to vector<8x1xf32>
    %8 = arith.addf %6, %7 : vector<8x1xf32>
    %c0_5 = arith.constant 0 : index
    %c0_6 = arith.constant 0 : index
    %9 = vector.load %arg4[%c0_5, %c0_6] : memref<8x1xf32, #tpu.memory_space<vmem>>, vector<8x1xf32>
    tpu.vector_store %arg4[%c0_5, %c0_6], %8 {strides = array<i32>} : memref<8x1xf32, #tpu.memory_space<vmem>>, vector<8x1xf32>,
    return
  }
  func.func @transform_0(%arg0: i32) -> (i32, i32) {
    %c0_i32 = arith.constant 0 : i32
    %c0_i32_0 = arith.constant 0 : i32
    return %arg0, %c0_i32 : i32, i32
  }
  func.func @transform_1(%arg0: i32) -> (i32, i32) {
    %c0_i32 = arith.constant 0 : i32
    %c0_i32_0 = arith.constant 0 : i32
    %c0_i32_1 = arith.constant 0 : i32
    return %c0_i32, %c0_i32_0 : i32, i32
  }
  func.func @transform_2(%arg0: i32) -> (i32, i32) {
    %c0_i32 = arith.constant 0 : i32
    %c0_i32_0 = arith.constant 0 : i32
    %c0_i32_1 = arith.constant 0 : i32
    return %c0_i32, %c0_i32_0 : i32, i32
  }
  func.func @transform_3(%arg0: i32) -> (i32, i32) {
    %c0_i32 = arith.constant 0 : i32
    %c0_i32_0 = arith.constant 0 : i32
    return %arg0, %c0_i32 : i32, i32
  }
}

</mosaic_0001>

<llo_original>
// kernel: tpu_custom_call.1
$region0: #{tpu_custom_call.1}
  #allocation0 [shape = 'u32[]', space=smem, size = 0x4, offset = 0x4, fixed_abs, tag = 'smem constant byte address 0x4 - core index']
  #allocation1 [shape = 'u32[144,128]{1,0:T(1,128)}', space=vmem, size = 0x12000, scoped, tag = 'internal scratch']
  #allocation2 [shape = 'f32[1,1]{1,0:T(1,128)S(6)}', space=smem, size = 0x200, scoped, tag = 'scoped memory for tpu_custom_call.1']
  %s0 = inlined_call_operand.hbm [shape: f32[8,32], index: 0, kind: input, shape index: {}]
  %s1 = inlined_call_operand.vmem [shape: f32[1,32], index: 1, kind: input, shape index: {}]
  %s2 = inlined_call_operand.<no memory space> [shape: f32[1,1], index: 2, kind: input, shape index: {}]
  %s3 = inlined_call_operand.hbm [shape: f32[1,1,8], index: 3, kind: output, shape index: {}]
  %s4 = sld [smem:[#allocation0]]
  $region26: #{tpu_custom_call.1} parent=0
    _
  %s6 = ssub.s32 1, %s4
  %s7 = scalar_select 0, %s6, %s4
  %8 = sst [smem:[#allocation2]] %s2
  $region1: #{tpu_custom_call.1} parent=0
    #allocation3 [shape = 'u8[4096]{0}', space=vmem, size = 0x1000, scoped, tag = 'input window, operand 0, single buffered']
    #allocation4 [shape = 's32[1]{0}', space=sflag, size = 0x4, scoped, tag = 'scoped memory for tpu_custom_call.1']
    #allocation5 [shape = 's32[1]{0}', space=sflag, size = 0x4, scoped, tag = 'scoped memory for tpu_custom_call.1']
    #allocation6 [shape = 'u8[512]{0}', space=vmem, size = 0x400, scoped, tag = 'output window, operand 0, single buffered']
    %9 = vsyncpa [#allocation4], 0
    %10 = vsyncpa [#allocation5], 0
    // Predicated region
    $region2: #{tpu_custom_call.1} parent=1 // pred_check
      _
    $region3: #{tpu_custom_call.1} parent=1 // pred_check_branch
      %12 = sbr.rel (0) target = $region5
    $region4: #{tpu_custom_call.1} parent=1 // pred_region
      %s14 = ssub.s32 128, 128
      %15 = vsyncadd [#allocation4], %s14
      %s17 = sshll.u32 [#allocation3], 4
      %s18 = int_to_ptr.vmem [resolvable:$true] %s17
      %20 = dma.hbm_to_vmem [thread:$0]  %s0, 128, %s18, [#allocation4]
    $region5: #{tpu_custom_call.1} parent=1 // pred_fallthru
      _
    // Predicated region
    $region6: #{tpu_custom_call.1} parent=1 // pred_check
      _
    $region7: #{tpu_custom_call.1} parent=1 // pred_check_branch
      %22 = sbr.rel (0) target = $region9
    $region8: #{tpu_custom_call.1} parent=1 // pred_region
      _
    $region9: #{tpu_custom_call.1} parent=1 // pred_fallthru
      _
    // Predicated region
    $region10: #{tpu_custom_call.1} parent=1 // pred_check
      _
    $region11: #{tpu_custom_call.1} parent=1 // pred_check_branch
      %24 = sbr.rel (0) target = $region13
    $region12: #{tpu_custom_call.1} parent=1 // pred_region
      _
    $region13: #{tpu_custom_call.1} parent=1 // pred_fallthru
      _
    // Predicated region
    $region14: #{tpu_custom_call.1} parent=1 // pred_check
      _
    $region15: #{tpu_custom_call.1} parent=1 // pred_check_branch
      %26 = sbr.rel (0) target = $region17
    $region16: #{tpu_custom_call.1} parent=1 // pred_region
      %27 = dma.done [#allocation4], 128
    $region17: #{tpu_custom_call.1} parent=1 // pred_fallthru
      _
    %v28 = vld [vmem:[#allocation3] sm:$0xff]
    %v29 = vld [vmem:[%s1] sm:$0x1]
    %s30 = sld [smem:[#allocation2]]
    %v32 = vlaneseq
    %v33 = vshrl.u32 %v32, 7
    %v34 = vsub.s32 0, %v33
    %v35 = vrot.slane %v29, %v34
    %v37 = vmul.f32 %v28, %v35
    %vm38 = vcmask 261120
    %v39 = vsel %vm38, %v37, 0.0
    %40 = vadd.xlane.f32.xlu0 %v39
    %v41 = vpop.xlane.xlu0 %40
    %v42 = vstv %s30
    %v43 = vadd.f32 %v41, %v42
    %v45 = vlaneseq
    %v46 = vand.u32 %v45, 127
    %v47 = vlaneseq
    %v48 = vshrl.u32 %v47, 7
    %v49 = vsub.s32 %v46, %v48
    %v50 = vrot.slane %v43, %v49
    %vm52 = vcmask 57344
    %53 = vst.msk [vmem:[#allocation6] sm:$0x1] %vm52, %v50
    // Predicated region
    $region18: #{tpu_custom_call.1} parent=1 // pred_check
      _
    $region19: #{tpu_custom_call.1} parent=1 // pred_check_branch
      %55 = sbr.rel (0) target = $region21
    $region20: #{tpu_custom_call.1} parent=1 // pred_region
      %s57 = ssub.s32 16, 16
      %58 = vsyncadd [#allocation5], %s57
      %s60 = sshll.u32 [#allocation6], 4
      %s61 = int_to_ptr.vmem [resolvable:$true] %s60
      %63 = dma.vmem_to_hbm [thread:$0]  %s61, 16, %s3, [#allocation5]
    $region21: #{tpu_custom_call.1} parent=1 // pred_fallthru
      _
    // Predicated region
    $region22: #{tpu_custom_call.1} parent=1 // pred_check
      _
    $region23: #{tpu_custom_call.1} parent=1 // pred_check_branch
      %65 = sbr.rel (0) target = $region25
    $region24: #{tpu_custom_call.1} parent=1 // pred_region
      %66 = dma.done [#allocation5], 16
    $region25: #{tpu_custom_call.1} parent=1 // pred_fallthru
      _
    %67 = vsyncpa [#allocation4], 1
    %68 = vsyncpa [#allocation5], 1

// kernel: tpu_custom_call.1
$region0: #{tpu_custom_call.1}
  #allocation0 [shape = 'u32[]', space=smem, size = 0x4, offset = 0x4, fixed_abs, tag = 'smem constant byte address 0x4 - core index']
  #allocation1 [shape = 'u32[144,128]{1,0:T(1,128)}', space=vmem, size = 0x12000, scoped, tag = 'internal scratch']
  #allocation2 [shape = 'f32[1,1]{1,0:T(1,128)S(6)}', space=smem, size = 0x200, scoped, tag = 'scoped memory for tpu_custom_call.1']
  %s0 = inlined_call_operand.hbm [shape: f32[8,32], index: 0, kind: input, shape index: {}]
  %s1 = inlined_call_operand.vmem [shape: f32[1,32], index: 1, kind: input, shape index: {}]
  %s2 = inlined_call_operand.<no memory space> [shape: f32[1,1], index: 2, kind: input, shape index: {}]
  %s3 = inlined_call_operand.vmem [shape: f32[8,1], index: 3, kind: output, shape index: {}]
  %s4 = sld [smem:[#allocation0]]
  $region26: #{tpu_custom_call.1} parent=0
    _
  %s6 = ssub.s32 1, %s4
  %s7 = scalar_select 0, %s6, %s4
  %8 = sst [smem:[#allocation2]] %s2
  $region1: #{tpu_custom_call.1} parent=0
    #allocation3 [shape = 'u8[4096]{0}', space=vmem, size = 0x1000, scoped, tag = 'input window, operand 0, single buffered']
    #allocation4 [shape = 's32[1]{0}', space=sflag, size = 0x4, scoped, tag = 'scoped memory for tpu_custom_call.1']
    %9 = vsyncpa [#allocation4], 0
    // Predicated region
    $region2: #{tpu_custom_call.1} parent=1 // pred_check
      _
    $region3: #{tpu_custom_call.1} parent=1 // pred_check_branch
      %11 = sbr.rel (0) target = $region5
    $region4: #{tpu_custom_call.1} parent=1 // pred_region
      %s13 = ssub.s32 128, 128
      %14 = vsyncadd [#allocation4], %s13
      %s16 = sshll.u32 [#allocation3], 4
      %s17 = int_to_ptr.vmem [resolvable:$true] %s16
      %19 = dma.hbm_to_vmem [thread:$0]  %s0, 128, %s17, [#allocation4]
    $region5: #{tpu_custom_call.1} parent=1 // pred_fallthru
      _
    // Predicated region
    $region6: #{tpu_custom_call.1} parent=1 // pred_check
      _
    $region7: #{tpu_custom_call.1} parent=1 // pred_check_branch
      %21 = sbr.rel (0) target = $region9
    $region8: #{tpu_custom_call.1} parent=1 // pred_region
      _
    $region9: #{tpu_custom_call.1} parent=1 // pred_fallthru
      _
    // Predicated region
    $region10: #{tpu_custom_call.1} parent=1 // pred_check
      _
    $region11: #{tpu_custom_call.1} parent=1 // pred_check_branch
      %23 = sbr.rel (0) target = $region13
    $region12: #{tpu_custom_call.1} parent=1 // pred_region
      _
    $region13: #{tpu_custom_call.1} parent=1 // pred_fallthru
      _
    // Predicated region
    $region14: #{tpu_custom_call.1} parent=1 // pred_check
      _
    $region15: #{tpu_custom_call.1} parent=1 // pred_check_branch
      %25 = sbr.rel (0) target = $region17
    $region16: #{tpu_custom_call.1} parent=1 // pred_region
      %26 = dma.done [#allocation4], 128
    $region17: #{tpu_custom_call.1} parent=1 // pred_fallthru
      _
    %v27 = vld [vmem:[#allocation3] sm:$0xff]
    %v28 = vld [vmem:[%s1] sm:$0x1]
    %s29 = sld [smem:[#allocation2]]
    %v31 = vlaneseq
    %v32 = vshrl.u32 %v31, 7
    %v33 = vsub.s32 0, %v32
    %v34 = vrot.slane %v28, %v33
    %v36 = vmul.f32 %v27, %v34
    %vm37 = vcmask 261120
    %v38 = vsel %vm37, %v36, 0.0
    %39 = vadd.xlane.f32.xlu0 %v38
    %v40 = vpop.xlane.xlu0 %39
    %v41 = vstv %s29
    %v42 = vadd.f32 %v40, %v41
    %vm43 = vcmask 7168
    %44 = vst.msk [vmem:[%s3] sm:$0xff] %vm43, %v42
    // Predicated region
    $region18: #{tpu_custom_call.1} parent=1 // pred_check
      _
    $region19: #{tpu_custom_call.1} parent=1 // pred_check_branch
      %46 = sbr.rel (0) target = $region21
    $region20: #{tpu_custom_call.1} parent=1 // pred_region
      _
    $region21: #{tpu_custom_call.1} parent=1 // pred_fallthru
      _
    // Predicated region
    $region22: #{tpu_custom_call.1} parent=1 // pred_check
      _
    $region23: #{tpu_custom_call.1} parent=1 // pred_check_branch
      %48 = sbr.rel (0) target = $region25
    $region24: #{tpu_custom_call.1} parent=1 // pred_region
      _
    $region25: #{tpu_custom_call.1} parent=1 // pred_fallthru
      _
    %49 = vsyncpa [#allocation4], 1

</llo_original>
